<compile_context>
chip_gen: v7x
topology: tpu7x:2x2x1
jax: 0.10.0
libtpu: 0.0.40
codegen_flags: <defaults>
</compile_context>

<pallas_src>
import functools

import jax
import jax.numpy as jnp
import numpy as np
from jax.experimental import pallas as pl
from jax.experimental.pallas import tpu as pltpu

FINAL_EMBEDDING_SIZE = 64   # F
OUTPUT_SIZE = 5             # O


# -----------------------------------------------------------------------------
# Pallas kernel: the Linear classifier hot path  (y = x @ W + b)
# -----------------------------------------------------------------------------
def classifier_kernel(x_ref, w_ref, b_ref, o_ref):
    # x_ref: (TM, F) bf16   w_ref: (F, O) bf16   b_ref: (1, O) f32   o_ref: (TM, O) f32
    acc = jnp.dot(x_ref[...], w_ref[...], preferred_element_type=jnp.float32)
    # Bias is a grid-resident (1, O) f32 VMEM tile; the add happens on the f32
    # MXU accumulator (safe on v5e despite no bf16 VPU).
    o_ref[...] = (acc + b_ref[...]).astype(o_ref.dtype)


def _round_up(x, m):
    return ((x + m - 1) // m) * m


@functools.partial(jax.jit, static_argnames=("tm",))
def maml_classifier(x, w_t, b_row, *, tm=8192):
    """y = x @ W^T + b for the Linear(64 -> 5) classifier.

    x     : (B, F) float32 (or bf16) feature embeddings
    w_t   : (F, O) pre-transposed PyTorch weight
    b_row : (1, O) float32 bias
    tm    : batch tile (multiple of 8); sweep 4096-8192 for large B.
    """
    B, F = x.shape
    O = w_t.shape[1]

    # bf16 inputs halve the dominant (x) HBM read; f32 accumulation preserved.
    x_bf16 = x.astype(jnp.bfloat16)
    w_bf16 = w_t.astype(jnp.bfloat16)

    if B <= tm:
        TM = B                                          # single full-extent tile
    else:
        # >= 2 grid steps so v7x's dual TensorCores both get work.
        TM = min(tm, _round_up(pl.cdiv(B, 2), 8))
    grid = (pl.cdiv(B, TM),)

    flops = 2 * B * F * O
    bytes_accessed = B * F * 2 + F * O * 2 + O * 4 + B * O * 4

    return pl.pallas_call(
        classifier_kernel,
        out_shape=jax.ShapeDtypeStruct((B, O), jnp.float32),
        grid=grid,
        in_specs=[
            pl.BlockSpec((TM, F), lambda i: (i, 0)),    # batch-tiled input
            pl.BlockSpec((F, O), lambda i: (0, 0)),     # resident weight
            pl.BlockSpec((1, O), lambda i: (0, 0)),     # resident bias
        ],
        out_specs=pl.BlockSpec((TM, O), lambda i: (i, 0)),
        compiler_params=pltpu.CompilerParams(
            dimension_semantics=("parallel",),          # v7x dual-TC sharding
            allow_input_fusion=[True, False, False],    # fuse x's producer
            vmem_limit_bytes=32 << 20,                  # v5e default is 16 MiB
        ),
        cost_estimate=pl.CostEstimate(
            flops=flops, transcendentals=0, bytes_accessed=bytes_accessed),
    )(x_bf16, w_bf16, b_row)


# -----------------------------------------------------------------------------
# Model wrapper (glue in plain JAX)
# -----------------------------------------------------------------------------
def init_params(key):
    """maml_init_: xavier_uniform_(weight, gain=1.0); constant_(bias, 0.0).

    PyTorch weight is (out, in) = (5, 64); xavier bound = sqrt(6/(fan_in+fan_out)).
    Layout ops (transpose / bias reshape) are done ONCE here, not per forward.
    """
    fan_in, fan_out = FINAL_EMBEDDING_SIZE, OUTPUT_SIZE
    bound = float(np.sqrt(6.0 / (fan_in + fan_out)))
    w = jax.random.uniform(
        key, (OUTPUT_SIZE, FINAL_EMBEDDING_SIZE),
        minval=-bound, maxval=bound, dtype=jnp.float32,
    )
    w_t = jnp.transpose(w)                                   # (F, O), one-time
    b_row = jnp.zeros((1, OUTPUT_SIZE), dtype=jnp.float32)   # (1, O)
    return w_t, b_row


def maml_forward(x, w_t, b_row):
    """Full MAMLModel.forward: classifier(features(x))."""
    # TODO(synk): feature_extractor ("camilenet" backbone) is an injected
    # nn.Module with no definition in this source file; modeled as identity.
    feats = x
    return maml_classifier(feats, w_t, b_row)


if __name__ == "__main__":
    key = jax.random.PRNGKey(0)
    k_x, k_w = jax.random.split(key)

    # Small shapes: batch=8, final_embedding_size=64
    x = jax.random.normal(k_x, (8, FINAL_EMBEDDING_SIZE), dtype=jnp.float32)
    w_t, b_row = init_params(k_w)

    out = maml_forward(x, w_t, b_row)
    out = jax.block_until_ready(out)

    # Reference check (plain JAX) with the same bf16 input quantization the
    # kernel applies; accumulation is f32 in both.
    x_q = x.astype(jnp.bfloat16).astype(jnp.float32)
    w_q = w_t.astype(jnp.bfloat16).astype(jnp.float32)
    ref = x_q @ w_q + b_row
    np.testing.assert_allclose(np.asarray(out), np.asarray(ref),
                               rtol=1e-4, atol=1e-4)
    assert out.shape == (8, OUTPUT_SIZE)

    print("KERNEL_OK")
</pallas_src>

<mosaic_0001>
module attributes {stable_mosaic.version = 11 : i64} {
  func.func @classifier_kernel(%arg0: i32, %arg1: memref<8x64xbf16, #tpu.memory_space<vmem>>, %arg2: memref<64x5xbf16, #tpu.memory_space<vmem>>, %arg3: memref<1x5xf32, #tpu.memory_space<vmem>>, %arg4: memref<8x5xf32, #tpu.memory_space<vmem>>) attributes {dimension_semantics = [#tpu.dimension_semantics<parallel>], iteration_bounds = array<i64: 1>, scalar_prefetch = 0 : i64, scratch_operands = 0 : i64, tpu.core_type = #tpu.core_type<tc>, window_params = [{transform_indices = @transform_0, window_bounds = array<i64: 8, 64>}, {pipeline_mode = #tpu.pipeline_mode<synchronous>, transform_indices = @transform_1, window_bounds = array<i64: 64, 5>}, {pipeline_mode = #tpu.pipeline_mode<synchronous>, transform_indices = @transform_2, window_bounds = array<i64: 1, 5>}, {transform_indices = @transform_3, window_bounds = array<i64: 8, 5>}]} {
    %c0 = arith.constant 0 : index
    %c0_0 = arith.constant 0 : index
    %0 = vector.load %arg1[%c0, %c0_0] : memref<8x64xbf16, #tpu.memory_space<vmem>>, vector<8x64xbf16>
    %c0_1 = arith.constant 0 : index
    %c0_2 = arith.constant 0 : index
    %1 = vector.load %arg2[%c0_1, %c0_2] : memref<64x5xbf16, #tpu.memory_space<vmem>>, vector<64x5xbf16>
    %cst = arith.constant dense<0.000000e+00> : vector<8x5xf32>
    %2 = tpu.matmul %0, %1, %cst {dimension_numbers = #tpu.dot_dimension_numbers<[1], [0], [0], [1], [0, 0, 1, 1], [], []>} : vector<8x64xbf16>, vector<64x5xbf16>, vector<8x5xf32> -> vector<8x5xf32>
    %c0_3 = arith.constant 0 : index
    %c0_4 = arith.constant 0 : index
    %3 = vector.load %arg3[%c0_3, %c0_4] : memref<1x5xf32, #tpu.memory_space<vmem>>, vector<1x5xf32>
    %4 = vector.broadcast %3 : vector<1x5xf32> to vector<8x5xf32>
    %5 = arith.addf %2, %4 : vector<8x5xf32>
    %c0_5 = arith.constant 0 : index
    %c0_6 = arith.constant 0 : index
    %6 = vector.load %arg4[%c0_5, %c0_6] : memref<8x5xf32, #tpu.memory_space<vmem>>, vector<8x5xf32>
    tpu.vector_store %arg4[%c0_5, %c0_6], %5 {strides = array<i32>} : memref<8x5xf32, #tpu.memory_space<vmem>>, vector<8x5xf32>,
    return
  }
  func.func @transform_0(%arg0: i32) -> (i32, i32) {
    %c0_i32 = arith.constant 0 : i32
    %c0_i32_0 = arith.constant 0 : i32
    return %arg0, %c0_i32 : i32, i32
  }
  func.func @transform_1(%arg0: i32) -> (i32, i32) {
    %c0_i32 = arith.constant 0 : i32
    %c0_i32_0 = arith.constant 0 : i32
    %c0_i32_1 = arith.constant 0 : i32
    return %c0_i32, %c0_i32_0 : i32, i32
  }
  func.func @transform_2(%arg0: i32) -> (i32, i32) {
    %c0_i32 = arith.constant 0 : i32
    %c0_i32_0 = arith.constant 0 : i32
    %c0_i32_1 = arith.constant 0 : i32
    return %c0_i32, %c0_i32_0 : i32, i32
  }
  func.func @transform_3(%arg0: i32) -> (i32, i32) {
    %c0_i32 = arith.constant 0 : i32
    %c0_i32_0 = arith.constant 0 : i32
    return %arg0, %c0_i32 : i32, i32
  }
}

</mosaic_0001>

<llo_original>
// kernel: maml_classifier.2
$region0: #{maml_classifier.2}
  #allocation0 [shape = 'u32[]', space=smem, size = 0x4, offset = 0x4, fixed_abs, tag = 'smem constant byte address 0x4 - core index']
  #allocation1 [shape = 'u32[144,128]{1,0:T(1,128)}', space=vmem, size = 0x12000, scoped, tag = 'internal scratch']
  %s0 = inlined_call_operand.vmem [shape: bf16[64,5], index: 0, kind: input, shape index: {}]
  %s1 = inlined_call_operand.vmem [shape: f32[1,5], index: 1, kind: input, shape index: {}]
  %s2 = inlined_call_operand.vmem [shape: f32[8,64], index: 2, kind: input, shape index: {}]
  %s3 = inlined_call_operand.hbm [shape: f32[8,5], index: 3, kind: output, shape index: {}]
  %s4 = sld [smem:[#allocation0]]
  $region22: #{maml_classifier.2} parent=0
    _
  %s6 = ssub.s32 1, %s4
  %s7 = scalar_select 0, %s6, %s4
  $region1: #{maml_classifier.2} parent=0
    #allocation2 [shape = 'u8[4096]{0}', space=vmem, size = 0x1000, scoped, tag = 'output window, operand 0, single buffered']
    #allocation3 [shape = 's32[1]{0}', space=sflag, size = 0x4, scoped, tag = 'scoped memory for maml_classifier.2']
    #allocation4 [shape = 'u8[2048]{0}', space=vmem, size = 0x800, dematerialized = true, scoped, tag = 'FusionAdapter Buffer %fusion.1 = bf16[8,64]{1,0:T(8,128)(2,1)} fusion(%param_2.1), kind=kLoop, calls=%fused_computation.1.clone, metadata={op_name="jit(maml_classifier)/convert_element_type" stack_frame_id=8}']
    %8 = vsyncpa [#allocation3], 0
    // Predicated region
    $region2: #{maml_classifier.2} parent=1 // pred_check
      _
    $region3: #{maml_classifier.2} parent=1 // pred_check_branch
      %10 = sbr.rel (0) target = $region5
    $region4: #{maml_classifier.2} parent=1 // pred_region
      _
    $region5: #{maml_classifier.2} parent=1 // pred_fallthru
      _
    // Predicated region
    $region6: #{maml_classifier.2} parent=1 // pred_check
      _
    $region7: #{maml_classifier.2} parent=1 // pred_check_branch
      %12 = sbr.rel (0) target = $region9
    $region8: #{maml_classifier.2} parent=1 // pred_region
      _
    $region9: #{maml_classifier.2} parent=1 // pred_fallthru
      _
    // Predicated region
    $region10: #{maml_classifier.2} parent=1 // pred_check
      _
    $region11: #{maml_classifier.2} parent=1 // pred_check_branch
      %14 = sbr.rel (0) target = $region13
    $region12: #{maml_classifier.2} parent=1 // pred_region
      _
    $region13: #{maml_classifier.2} parent=1 // pred_fallthru
      _
    %v15 = vld [vmem:[%s2] sm:$0xff]
    %16 = xla_tuple %v15
    %17 = xla_tuple %16
    %18 = xla_tuple %v15
    %v19 = vpack.c.bf16 0.0, %v15
    %21 = vst [vmem:[#allocation4] sm:$0xf] %v19
    %v23 = vld [vmem:[#allocation4] sm:$0xf]
    %v24 = vld [vmem:[%s0] sm:$0xf]
    %v25 = vld [vmem:[%s0 + $0x4] sm:$0xf]
    %v26 = vld [vmem:[%s0 + $0x8] sm:$0xf]
    %v27 = vld [vmem:[%s0 + $0xc] sm:$0xf]
    %v28 = vld [vmem:[%s0 + $0x10] sm:$0xf]
    %v29 = vld [vmem:[%s0 + $0x14] sm:$0xf]
    %v30 = vld [vmem:[%s0 + $0x18] sm:$0xf]
    %v31 = vld [vmem:[%s0 + $0x1c] sm:$0xf]
    %v32 = vld [vmem:[%s1] sm:$0x1]
    %v34 = vlaneseq
    %v35 = vshrl.u32 %v34, 7
    %v36 = vsub.s32 0, %v35
    %v37 = vrot.slane %v32, %v36
    %v47 = vunpack.c.l.b16 %v24
    %v48 = vunpack.c.l.b16 %v25
    %v49 = vunpack.c.l.b16 %v26
    %v50 = vunpack.c.l.b16 %v27
    %v51 = vunpack.c.l.b16 %v28
    %v52 = vunpack.c.l.b16 %v29
    %v53 = vunpack.c.l.b16 %v30
    %v54 = vunpack.c.l.b16 %v31
    %v55 = vpack.c.b16 %v48, %v47
    %v56 = vpack.c.b16 %v50, %v49
    %v57 = vpack.c.b16 %v52, %v51
    %v58 = vpack.c.b16 %v54, %v53
    %vm63 = vcmask 523264
    %v65 = vsel %vm63, %v23, 0
    %67 = vmatprep.subr.bf16.mxu0 0
    %68 = vmatpush1.bf16.msra.mxu0 %v55
    %69 = vmatprep.subr.bf16.mxu0 0
    %70 = vmatpush1.bf16.msra.mxu0 %v56
    %71 = vmatprep.subr.bf16.mxu0 0
    %72 = vmatpush1.bf16.msra.mxu0 %v57
    %73 = vmatprep.subr.bf16.mxu0 0
    %74 = vmatpush1.bf16.msra.mxu0 %v58
    %75 = vmatprep.subr.bf16.mxu0 0
    %76 = vmatpush1.bf16.msra.mxu0 0
    %77 = vmatprep.subr.bf16.mxu0 0
    %78 = vmatpush1.bf16.msra.mxu0 0
    %79 = vmatprep.subr.bf16.mxu0 0
    %80 = vmatpush1.bf16.msra.mxu0 0
    %81 = vmatprep.subr.bf16.mxu0 0
    %82 = vmatpush1.bf16.msra.mxu0 0
    %83 = vmatprep.subr.bf16.mxu0 0
    %84 = vmatpush1.bf16.msra.mxu0 0
    %85 = vmatprep.subr.bf16.mxu0 0
    %86 = vmatpush1.bf16.msra.mxu0 0
    %87 = vmatprep.subr.bf16.mxu0 0
    %88 = vmatpush1.bf16.msra.mxu0 0
    %89 = vmatprep.subr.bf16.mxu0 0
    %90 = vmatpush1.bf16.msra.mxu0 0
    %91 = vmatprep.subr.bf16.mxu0 0
    %92 = vmatpush1.bf16.msra.mxu0 0
    %93 = vmatprep.subr.bf16.mxu0 0
    %94 = vmatpush1.bf16.msra.mxu0 0
    %95 = vmatprep.subr.bf16.mxu0 0
    %96 = vmatpush1.bf16.msra.mxu0 0
    %97 = vmatprep.subr.bf16.mxu0 0
    %98 = vmatpush1.bf16.msra.mxu0 0
    %99 = vmatprep.mubr.bf16.mxu0 0
    %100 = vmatmul.mubr.bf16.gmra.mrb[0].mxu0 %v65
    %v101 = vpop.f32.mrb[0].mxu0
    %v102 = vadd.f32 %v37, %v101
    %v103 = vpop.f32.mrb[0].mxu0
    %v104 = vpop.f32.mrb[0].mxu0
    %v105 = vpop.f32.mrb[0].mxu0
    %106 = vdwg.mxu0
    %vm107 = vcmask 39936
    %108 = vst.msk [vmem:[#allocation2] sm:$0xff] %vm107, %v102
    // Predicated region
    $region14: #{maml_classifier.2} parent=1 // pred_check
      _
    $region15: #{maml_classifier.2} parent=1 // pred_check_branch
      %110 = sbr.rel (0) target = $region17
    $region16: #{maml_classifier.2} parent=1 // pred_region
      %s112 = ssub.s32 128, 128
      %113 = vsyncadd [#allocation3], %s112
      %s115 = sshll.u32 [#allocation2], 4
      %s116 = int_to_ptr.vmem [resolvable:$true] %s115
      %118 = dma.vmem_to_hbm [thread:$0]  %s116, 128, %s3, [#allocation3]
    $region17: #{maml_classifier.2} parent=1 // pred_fallthru
      _
    // Predicated region
    $region18: #{maml_classifier.2} parent=1 // pred_check
      _
    $region19: #{maml_classifier.2} parent=1 // pred_check_branch
      %120 = sbr.rel (0) target = $region21
    $region20: #{maml_classifier.2} parent=1 // pred_region
      %121 = dma.done [#allocation3], 128
    $region21: #{maml_classifier.2} parent=1 // pred_fallthru
      _
    %122 = vsyncpa [#allocation3], 1

</llo_original>
